<compile_context>
chip_gen: v7x
topology: tpu7x:2x2x1
jax: 0.10.0
libtpu: 0.0.40
codegen_flags: <defaults>
</compile_context>

<pallas_src>
import functools
import math

import jax
import jax.numpy as jnp
from jax.experimental import pallas as pl
from jax.experimental.pallas import tpu as pltpu

# ----------------------------- configuration -------------------------------
OBS_DIM = 12          # observation_space.shape[0]
ACT_DIM = 4           # action_space.shape[0]
HIDDEN = (32, 32)     # ac_kwargs['pi']['hidden_sizes'] == ac_kwargs['q']['hidden_sizes']
ACT_LIMIT = 1.0       # action_space.high[0]
BATCH = 2
DTYPE = jnp.float32
WEIGHT_DTYPE = jnp.bfloat16   # HBM storage for weight matrices; math is f32

TILE_ROWS = 1024      # max batch rows per grid step


# ------------------------------ small helpers ------------------------------
def _round_up(x, m):
    return -(-x // m) * m


def _batch_tiling(batch, granule=8):
    """Pick (tile_rows, padded_batch); >=2 grid steps when possible (v7x 2 TCs)."""
    rows = _round_up(max(batch, 1), granule)
    if rows >= 2 * granule:
        tb = min(TILE_ROWS, _round_up(-(-rows // 2), granule))
    else:
        tb = rows
    return tb, _round_up(rows, tb)


def _granule(*arrays):
    # bf16 operands need a 16-row sublane granule; f32 needs 8.
    return 16 if any(jnp.dtype(a.dtype).itemsize < 4 for a in arrays) else 8


def _row_spec(tb, cols):
    # Batch-tiled operand: block advances along the grid's batch axis.
    return pl.BlockSpec((tb, cols), lambda i: (i, 0))


def _const_spec(arr):
    # Weight/bias operand: constant block index -> DMA'd once, VMEM-resident.
    return pl.BlockSpec(arr.shape, lambda i: (0,) * arr.ndim)


def _pad_rows(x, rows):
    return x if x.shape[0] == rows else jnp.pad(x, ((0, rows - x.shape[0]), (0, 0)))


def _f32(ref):
    return ref[...].astype(jnp.float32)


# ------------------------------ kernel bodies ------------------------------
def _actor_body(x, w1, b1, w2, b2, w3, b3, act_limit):
    h = jnp.maximum(jnp.dot(x, w1, preferred_element_type=jnp.float32) + b1, 0.0)
    h = jnp.maximum(jnp.dot(h, w2, preferred_element_type=jnp.float32) + b2, 0.0)
    a = jnp.tanh(jnp.dot(h, w3, preferred_element_type=jnp.float32) + b3)
    return act_limit * a


def _q_body(obs, act, w1o, w1a, b1, w2, b2, w3, b3):
    # Split-W1 form of q(cat(obs, act)): no lane-axis concat needed.
    h = (jnp.dot(obs, w1o, preferred_element_type=jnp.float32)
         + jnp.dot(act, w1a, preferred_element_type=jnp.float32) + b1)
    h = jnp.maximum(h, 0.0)
    h = jnp.maximum(jnp.dot(h, w2, preferred_element_type=jnp.float32) + b2, 0.0)
    return jnp.dot(h, w3, preferred_element_type=jnp.float32) + b3


def _actor_kernel(obs_ref, w1, b1, w2, b2, w3, b3, out_ref, *, act_limit):
    a = _actor_body(_f32(obs_ref), _f32(w1), _f32(b1), _f32(w2), _f32(b2),
                    _f32(w3), _f32(b3), act_limit)
    out_ref[...] = a.astype(out_ref.dtype)


def _q_kernel(obs_ref, act_ref, w1o, w1a, b1, w2, b2, w3, b3, out_ref):
    q = _q_body(_f32(obs_ref), _f32(act_ref), _f32(w1o), _f32(w1a), _f32(b1),
                _f32(w2), _f32(b2), _f32(w3), _f32(b3))
    out_ref[...] = q.astype(out_ref.dtype)


def _actor_q_kernel(obs_ref,
                    pw1, pb1, pw2, pb2, pw3, pb3,
                    qw1o, qw1a, qb1, qw2, qb2, qw3, qb3,
                    act_out_ref, q_out_ref, *, act_limit):
    obs = _f32(obs_ref)
    a = _actor_body(obs, _f32(pw1), _f32(pb1), _f32(pw2), _f32(pb2),
                    _f32(pw3), _f32(pb3), act_limit)
    act_out_ref[...] = a.astype(act_out_ref.dtype)
    q = _q_body(obs, a, _f32(qw1o), _f32(qw1a), _f32(qb1),
                _f32(qw2), _f32(qb2), _f32(qw3), _f32(qb3))
    q_out_ref[...] = q.astype(q_out_ref.dtype)


# -------------------- parameter preparation (build-time) --------------------
def prepare_pi_params(pi_params, weight_dtype=WEIGHT_DTYPE):
    """One-time: (w, b) pairs -> flat (w1, b1, w2, b2, w3, b3); weights in bf16."""
    flat = []
    for w, b in pi_params:
        flat.append(jnp.asarray(w, weight_dtype))
        flat.append(jnp.asarray(b, jnp.float32).reshape(1, -1))
    return tuple(flat)


def prepare_q_params(q_params, obs_dim, weight_dtype=WEIGHT_DTYPE):
    """One-time: split W1 into obs/act halves; weights in bf16, biases f32."""
    (w1, b1), (w2, b2), (w3, b3) = q_params
    return (jnp.asarray(w1[:obs_dim], weight_dtype),
            jnp.asarray(w1[obs_dim:], weight_dtype),
            jnp.asarray(b1, jnp.float32).reshape(1, -1),
            jnp.asarray(w2, weight_dtype),
            jnp.asarray(b2, jnp.float32).reshape(1, -1),
            jnp.asarray(w3, weight_dtype),
            jnp.asarray(b3, jnp.float32).reshape(1, -1))


# ------------------------------- forward ops --------------------------------
_PARALLEL = pltpu.CompilerParams(dimension_semantics=("parallel",))


def actor_forward(obs, pi_p, act_limit):
    """act_limit * pi(obs) — MLPActor.forward / MLPActorCritic.act."""
    batch, obs_dim = obs.shape
    act_dim = pi_p[4].shape[1]
    tb, b_pad = _batch_tiling(batch, _granule(obs))
    obs_p = _pad_rows(obs, b_pad)

    out = pl.pallas_call(
        functools.partial(_actor_kernel, act_limit=float(act_limit)),
        out_shape=jax.ShapeDtypeStruct((b_pad, act_dim), DTYPE),
        grid=(b_pad // tb,),
        in_specs=[_row_spec(tb, obs_dim)] + [_const_spec(a) for a in pi_p],
        out_specs=_row_spec(tb, act_dim),
        compiler_params=_PARALLEL,
    )(obs_p, *pi_p)
    return out[:batch]


def q_forward(obs, act, q_p):
    """q(cat(obs, act)) squeezed on the last axis — MLPQFunction.forward."""
    batch, obs_dim = obs.shape
    act_dim = act.shape[1]
    tb, b_pad = _batch_tiling(batch, _granule(obs, act))
    obs_p = _pad_rows(obs, b_pad)
    act_p = _pad_rows(act, b_pad)

    q = pl.pallas_call(
        _q_kernel,
        out_shape=jax.ShapeDtypeStruct((b_pad, 1), DTYPE),
        grid=(b_pad // tb,),
        in_specs=[_row_spec(tb, obs_dim), _row_spec(tb, act_dim)]
                 + [_const_spec(a) for a in q_p],
        out_specs=_row_spec(tb, 1),
        compiler_params=_PARALLEL,
    )(obs_p, act_p, *q_p)
    return q[:batch, 0]


def actor_q_forward(obs, pi_p, q_p, act_limit):
    """Fused DDPG hot path: (act_limit * pi(obs), Q(obs, pi(obs))) in one kernel."""
    batch, obs_dim = obs.shape
    act_dim = pi_p[4].shape[1]
    tb, b_pad = _batch_tiling(batch, _granule(obs))
    obs_p = _pad_rows(obs, b_pad)

    weights = pi_p + q_p
    act_out, q_out = pl.pallas_call(
        functools.partial(_actor_q_kernel, act_limit=float(act_limit)),
        out_shape=(jax.ShapeDtypeStruct((b_pad, act_dim), DTYPE),
                   jax.ShapeDtypeStruct((b_pad, 1), DTYPE)),
        grid=(b_pad // tb,),
        in_specs=[_row_spec(tb, obs_dim)] + [_const_spec(a) for a in weights],
        out_specs=(_row_spec(tb, act_dim), _row_spec(tb, 1)),
        compiler_params=_PARALLEL,
    )(obs_p, *weights)
    return act_out[:batch], q_out[:batch, 0]


def make_ddpg_forward(pi_params, q_params, act_limit, obs_dim):
    """Build jitted callables with parameters pre-packed once (no per-call prep)."""
    pi_p = prepare_pi_params(pi_params)
    q_p = prepare_q_params(q_params, obs_dim)

    act_fn = jax.jit(lambda obs: actor_forward(obs, pi_p, act_limit))
    q_fn = jax.jit(lambda obs, act: q_forward(obs, act, q_p))
    act_q_fn = jax.jit(lambda obs: actor_q_forward(obs, pi_p, q_p, act_limit))

    def forward(obs):            # MLPActorCritic.forward(obs) -> (action, None)
        return act_fn(obs), None

    return act_fn, q_fn, act_q_fn, forward, pi_p, q_p


# --------------------------- parameter construction -------------------------
def _init_linear(key, fan_in, fan_out):
    # PyTorch nn.Linear default init: U(-1/sqrt(fan_in), 1/sqrt(fan_in)).
    kw, kb = jax.random.split(key)
    bound = 1.0 / math.sqrt(fan_in)
    w = jax.random.uniform(kw, (fan_in, fan_out), DTYPE, -bound, bound)
    b = jax.random.uniform(kb, (fan_out,), DTYPE, -bound, bound)
    return w, b


def _init_mlp(key, sizes):
    keys = jax.random.split(key, len(sizes) - 1)
    return [_init_linear(k, sizes[i], sizes[i + 1]) for i, k in enumerate(keys)]


# ------------------------------ pure-JAX reference ---------------------------
def _ref_mlp(x, params, out_act):
    h = x
    for i, (w, b) in enumerate(params):
        h = h @ w + jnp.reshape(b, (1, -1))
        h = jax.nn.relu(h) if i < len(params) - 1 else out_act(h)
    return h


def _ref_actor(obs, params, act_limit):
    return act_limit * _ref_mlp(obs, params, jnp.tanh)


def _ref_q(obs, act, params):
    x = jnp.concatenate([obs, act], axis=-1)
    return jnp.squeeze(_ref_mlp(x, params, lambda v: v), -1)


def _pi_ref_params(pi_p):
    """Reference params using the exact (bf16-rounded) values the kernel streams."""
    w1, b1, w2, b2, w3, b3 = pi_p
    f = lambda a: a.astype(jnp.float32)
    return [(f(w1), b1), (f(w2), b2), (f(w3), b3)]


def _q_ref_params(q_p):
    w1o, w1a, b1, w2, b2, w3, b3 = q_p
    f = lambda a: a.astype(jnp.float32)
    return [(jnp.concatenate([f(w1o), f(w1a)], axis=0), b1), (f(w2), b2), (f(w3), b3)]


# ----------------------------------- main ------------------------------------
if __name__ == "__main__":
    root = jax.random.PRNGKey(0)
    k_obs, k_pi, k_q = jax.random.split(root, 3)

    obs = jax.random.normal(k_obs, (BATCH, OBS_DIM), DTYPE)
    pi_params = _init_mlp(k_pi, [OBS_DIM] + list(HIDDEN) + [ACT_DIM])
    q_params = _init_mlp(k_q, [OBS_DIM + ACT_DIM] + list(HIDDEN) + [1])

    act_fn, q_fn, act_q_fn, forward, pi_p, q_p = make_ddpg_forward(
        pi_params, q_params, ACT_LIMIT, OBS_DIM)
    pi_ref = _pi_ref_params(pi_p)
    q_ref_p = _q_ref_params(q_p)

    # MLPActorCritic.forward(obs) -> (act_limit * pi(obs), None)
    action, extra = forward(obs)
    action = jax.block_until_ready(action)
    assert extra is None and action.shape == (BATCH, ACT_DIM)

    # MLPQFunction.forward(obs, act)
    q_val = jax.block_until_ready(q_fn(obs, action))
    assert q_val.shape == (BATCH,)

    # Fused DDPG hot path Q(s, pi(s)) — one launch, no HBM round-trip of action.
    action_f, q_f = jax.block_until_ready(act_q_fn(obs))
    assert action_f.shape == (BATCH, ACT_DIM) and q_f.shape == (BATCH,)

    # Kernel-correctness check against a reference using the same streamed values.
    ra = _ref_actor(obs, pi_ref, ACT_LIMIT)
    rq = _ref_q(obs, ra, q_ref_p)
    assert bool(jnp.allclose(action, ra, atol=2e-3, rtol=2e-3))
    assert bool(jnp.allclose(action_f, ra, atol=2e-3, rtol=2e-3))
    assert bool(jnp.allclose(q_f, rq, atol=2e-3, rtol=2e-3))
    assert bool(jnp.allclose(q_val, _ref_q(obs, action, q_ref_p), atol=2e-3, rtol=2e-3))

    # Semantics check vs. the original full-precision (f32) parameters.
    ra_full = _ref_actor(obs, pi_params, ACT_LIMIT)
    rq_full = _ref_q(obs, ra_full, q_params)
    assert bool(jnp.allclose(action_f, ra_full, atol=5e-2, rtol=5e-2))
    assert bool(jnp.allclose(q_f, rq_full, atol=5e-2, rtol=5e-2))

    # Multi-tile batched path (grid >= 2, weights stay VMEM-resident across steps).
    big_obs = jax.random.normal(jax.random.PRNGKey(1), (600, OBS_DIM), DTYPE)
    big_a, big_q = jax.block_until_ready(act_q_fn(big_obs))
    assert big_a.shape == (600, ACT_DIM) and big_q.shape == (600,)
    big_ra = _ref_actor(big_obs, pi_ref, ACT_LIMIT)
    assert bool(jnp.allclose(big_a, big_ra, atol=2e-3, rtol=2e-3))
    assert bool(jnp.allclose(big_q, _ref_q(big_obs, big_ra, q_ref_p), atol=2e-3, rtol=2e-3))

    # bf16 obs streaming path (halves input HBM bytes on v6e/v7x; math stays f32).
    big_obs_bf16 = big_obs.astype(jnp.bfloat16)
    a16, q16 = jax.block_until_ready(act_q_fn(big_obs_bf16))
    ra16 = _ref_actor(big_obs_bf16.astype(DTYPE), pi_ref, ACT_LIMIT)
    assert bool(jnp.allclose(a16, ra16, atol=2e-3, rtol=2e-3))
    assert bool(jnp.allclose(q16, _ref_q(big_obs_bf16.astype(DTYPE), ra16, q_ref_p),
                             atol=2e-3, rtol=2e-3))

    print("KERNEL_OK")
</pallas_src>

<mosaic_0001>
module attributes {stable_mosaic.version = 11 : i64} {
  func.func @_actor_kernel(%arg0: i32, %arg1: memref<8x12xf32, #tpu.memory_space<vmem>>, %arg2: memref<12x32xbf16, #tpu.memory_space<vmem>>, %arg3: memref<1x32xf32, #tpu.memory_space<vmem>>, %arg4: memref<32x32xbf16, #tpu.memory_space<vmem>>, %arg5: memref<1x32xf32, #tpu.memory_space<vmem>>, %arg6: memref<32x4xbf16, #tpu.memory_space<vmem>>, %arg7: memref<1x4xf32, #tpu.memory_space<vmem>>, %arg8: memref<8x4xf32, #tpu.memory_space<vmem>>) attributes {dimension_semantics = [#tpu.dimension_semantics<parallel>], iteration_bounds = array<i64: 1>, scalar_prefetch = 0 : i64, scratch_operands = 0 : i64, tpu.core_type = #tpu.core_type<tc>, window_params = [{transform_indices = @transform_0, window_bounds = array<i64: 8, 12>}, {pipeline_mode = #tpu.pipeline_mode<synchronous>, transform_indices = @transform_1, window_bounds = array<i64: 12, 32>}, {pipeline_mode = #tpu.pipeline_mode<synchronous>, transform_indices = @transform_2, window_bounds = array<i64: 1, 32>}, {pipeline_mode = #tpu.pipeline_mode<synchronous>, transform_indices = @transform_3, window_bounds = array<i64: 32, 32>}, {pipeline_mode = #tpu.pipeline_mode<synchronous>, transform_indices = @transform_4, window_bounds = array<i64: 1, 32>}, {pipeline_mode = #tpu.pipeline_mode<synchronous>, transform_indices = @transform_5, window_bounds = array<i64: 32, 4>}, {pipeline_mode = #tpu.pipeline_mode<synchronous>, transform_indices = @transform_6, window_bounds = array<i64: 1, 4>}, {transform_indices = @transform_7, window_bounds = array<i64: 8, 4>}]} {
    %c0 = arith.constant 0 : index
    %c0_0 = arith.constant 0 : index
    %0 = vector.load %arg1[%c0, %c0_0] : memref<8x12xf32, #tpu.memory_space<vmem>>, vector<8x12xf32>
    %c0_1 = arith.constant 0 : index
    %c0_2 = arith.constant 0 : index
    %1 = vector.load %arg2[%c0_1, %c0_2] : memref<12x32xbf16, #tpu.memory_space<vmem>>, vector<12x32xbf16>
    %2 = arith.extf %1 : vector<12x32xbf16> to vector<12x32xf32>
    %c0_3 = arith.constant 0 : index
    %c0_4 = arith.constant 0 : index
    %3 = vector.load %arg3[%c0_3, %c0_4] : memref<1x32xf32, #tpu.memory_space<vmem>>, vector<1x32xf32>
    %c0_5 = arith.constant 0 : index
    %c0_6 = arith.constant 0 : index
    %4 = vector.load %arg4[%c0_5, %c0_6] : memref<32x32xbf16, #tpu.memory_space<vmem>>, vector<32x32xbf16>
    %5 = arith.extf %4 : vector<32x32xbf16> to vector<32x32xf32>
    %c0_7 = arith.constant 0 : index
    %c0_8 = arith.constant 0 : index
    %6 = vector.load %arg5[%c0_7, %c0_8] : memref<1x32xf32, #tpu.memory_space<vmem>>, vector<1x32xf32>
    %c0_9 = arith.constant 0 : index
    %c0_10 = arith.constant 0 : index
    %7 = vector.load %arg6[%c0_9, %c0_10] : memref<32x4xbf16, #tpu.memory_space<vmem>>, vector<32x4xbf16>
    %8 = arith.extf %7 : vector<32x4xbf16> to vector<32x4xf32>
    %c0_11 = arith.constant 0 : index
    %c0_12 = arith.constant 0 : index
    %9 = vector.load %arg7[%c0_11, %c0_12] : memref<1x4xf32, #tpu.memory_space<vmem>>, vector<1x4xf32>
    %cst = arith.constant dense<0.000000e+00> : vector<8x32xf32>
    %10 = tpu.matmul %0, %2, %cst {dimension_numbers = #tpu.dot_dimension_numbers<[1], [0], [0], [1], [0, 0, 1, 1], [], []>} : vector<8x12xf32>, vector<12x32xf32>, vector<8x32xf32> -> vector<8x32xf32>
    %11 = vector.broadcast %3 : vector<1x32xf32> to vector<8x32xf32>
    %12 = arith.addf %10, %11 : vector<8x32xf32>
    %cst_13 = arith.constant 0.000000e+00 : f32
    %13 = vector.broadcast %cst_13 : f32 to vector<8x32xf32>
    %14 = arith.maximumf %12, %13 : vector<8x32xf32>
    %cst_14 = arith.constant dense<0.000000e+00> : vector<8x32xf32>
    %15 = tpu.matmul %14, %5, %cst_14 {dimension_numbers = #tpu.dot_dimension_numbers<[1], [0], [0], [1], [0, 0, 1, 1], [], []>} : vector<8x32xf32>, vector<32x32xf32>, vector<8x32xf32> -> vector<8x32xf32>
    %16 = vector.broadcast %6 : vector<1x32xf32> to vector<8x32xf32>
    %17 = arith.addf %15, %16 : vector<8x32xf32>
    %cst_15 = arith.constant 0.000000e+00 : f32
    %18 = vector.broadcast %cst_15 : f32 to vector<8x32xf32>
    %19 = arith.maximumf %17, %18 : vector<8x32xf32>
    %cst_16 = arith.constant dense<0.000000e+00> : vector<8x4xf32>
    %20 = tpu.matmul %19, %8, %cst_16 {dimension_numbers = #tpu.dot_dimension_numbers<[1], [0], [0], [1], [0, 0, 1, 1], [], []>} : vector<8x32xf32>, vector<32x4xf32>, vector<8x4xf32> -> vector<8x4xf32>
    %21 = vector.broadcast %9 : vector<1x4xf32> to vector<8x4xf32>
    %22 = arith.addf %20, %21 : vector<8x4xf32>
    %23 = math.tanh %22 : vector<8x4xf32>
    %cst_17 = arith.constant 1.000000e+00 : f32
    %24 = vector.broadcast %cst_17 : f32 to vector<8x4xf32>
    %25 = arith.mulf %24, %23 : vector<8x4xf32>
    %c0_18 = arith.constant 0 : index
    %c0_19 = arith.constant 0 : index
    %26 = vector.load %arg8[%c0_18, %c0_19] : memref<8x4xf32, #tpu.memory_space<vmem>>, vector<8x4xf32>
    tpu.vector_store %arg8[%c0_18, %c0_19], %25 {strides = array<i32>} : memref<8x4xf32, #tpu.memory_space<vmem>>, vector<8x4xf32>,
    return
  }
  func.func @transform_0(%arg0: i32) -> (i32, i32) {
    %c0_i32 = arith.constant 0 : i32
    %c0_i32_0 = arith.constant 0 : i32
    return %arg0, %c0_i32 : i32, i32
  }
  func.func @transform_1(%arg0: i32) -> (i32, i32) {
    %c0_i32 = arith.constant 0 : i32
    %c0_i32_0 = arith.constant 0 : i32
    %c0_i32_1 = arith.constant 0 : i32
    return %c0_i32, %c0_i32_0 : i32, i32
  }
  func.func @transform_2(%arg0: i32) -> (i32, i32) {
    %c0_i32 = arith.constant 0 : i32
    %c0_i32_0 = arith.constant 0 : i32
    %c0_i32_1 = arith.constant 0 : i32
    return %c0_i32, %c0_i32_0 : i32, i32
  }
  func.func @transform_3(%arg0: i32) -> (i32, i32) {
    %c0_i32 = arith.constant 0 : i32
    %c0_i32_0 = arith.constant 0 : i32
    %c0_i32_1 = arith.constant 0 : i32
    return %c0_i32, %c0_i32_0 : i32, i32
  }
  func.func @transform_4(%arg0: i32) -> (i32, i32) {
    %c0_i32 = arith.constant 0 : i32
    %c0_i32_0 = arith.constant 0 : i32
    %c0_i32_1 = arith.constant 0 : i32
    return %c0_i32, %c0_i32_0 : i32, i32
  }
  func.func @transform_5(%arg0: i32) -> (i32, i32) {
    %c0_i32 = arith.constant 0 : i32
    %c0_i32_0 = arith.constant 0 : i32
    %c0_i32_1 = arith.constant 0 : i32
    return %c0_i32, %c0_i32_0 : i32, i32
  }
  func.func @transform_6(%arg0: i32) -> (i32, i32) {
    %c0_i32 = arith.constant 0 : i32
    %c0_i32_0 = arith.constant 0 : i32
    %c0_i32_1 = arith.constant 0 : i32
    return %c0_i32, %c0_i32_0 : i32, i32
  }
  func.func @transform_7(%arg0: i32) -> (i32, i32) {
    %c0_i32 = arith.constant 0 : i32
    %c0_i32_0 = arith.constant 0 : i32
    return %arg0, %c0_i32 : i32, i32
  }
}

</mosaic_0001>

<llo_original>
// kernel: _lambda_.1
$region0: #{_lambda_.1}
  #allocation0 [shape = 'u32[]', space=smem, size = 0x4, offset = 0x4, fixed_abs, tag = 'smem constant byte address 0x4 - core index']
  #allocation1 [shape = 'u32[144,128]{1,0:T(1,128)}', space=vmem, size = 0x12000, scoped, tag = 'internal scratch']
  %s0 = inlined_call_operand.vmem [shape: f32[8,12], index: 0, kind: input, shape index: {}]
  %s1 = inlined_call_operand.hbm [shape: bf16[12,32], index: 1, kind: input, shape index: {}]
  %s2 = inlined_call_operand.hbm [shape: f32[1,32], index: 2, kind: input, shape index: {}]
  %s3 = inlined_call_operand.vmem [shape: bf16[32,32], index: 3, kind: input, shape index: {}]
  %s4 = inlined_call_operand.hbm [shape: f32[1,32], index: 4, kind: input, shape index: {}]
  %s5 = inlined_call_operand.vmem [shape: bf16[32,4], index: 5, kind: input, shape index: {}]
  %s6 = inlined_call_operand.vmem [shape: f32[1,4], index: 6, kind: input, shape index: {}]
  %s7 = inlined_call_operand.vmem [shape: f32[8,4], index: 7, kind: output, shape index: {}]
  %s8 = sld [smem:[#allocation0]]
  $region50: #{_lambda_.1} parent=0
    _
  %s10 = ssub.s32 1, %s8
  %s11 = scalar_select 0, %s10, %s8
  $region1: #{_lambda_.1} parent=0
    #allocation2 [shape = 'u8[4096]{0}', space=vmem, size = 0x1000, scoped, tag = 'input window, operand 1, single buffered']
    #allocation3 [shape = 's32[1]{0}', space=sflag, size = 0x4, scoped, tag = 'scoped memory for _lambda_.1']
    #allocation4 [shape = 'u8[512]{0}', space=vmem, size = 0x400, scoped, tag = 'input window, operand 2, single buffered']
    #allocation5 [shape = 's32[1]{0}', space=sflag, size = 0x4, scoped, tag = 'scoped memory for _lambda_.1']
    #allocation6 [shape = 'u8[512]{0}', space=vmem, size = 0x400, scoped, tag = 'input window, operand 4, single buffered']
    %12 = vsyncpa [#allocation3], 0
    %13 = vsyncpa [#allocation5], 0
    // Predicated region
    $region2: #{_lambda_.1} parent=1 // pred_check
      _
    $region3: #{_lambda_.1} parent=1 // pred_check_branch
      %15 = sbr.rel (0) target = $region5
    $region4: #{_lambda_.1} parent=1 // pred_region
      _
    $region5: #{_lambda_.1} parent=1 // pred_fallthru
      _
    // Predicated region
    $region6: #{_lambda_.1} parent=1 // pred_check
      _
    $region7: #{_lambda_.1} parent=1 // pred_check_branch
      %17 = sbr.rel (0) target = $region9
    $region8: #{_lambda_.1} parent=1 // pred_region
      %s19 = ssub.s32 128, 128
      %20 = vsyncadd [#allocation3], %s19
      %s21 = sshll.u32 [#allocation2], 4
      %s22 = int_to_ptr.vmem [resolvable:$true] %s21
      %27 = dma.hbm_to_vmem [thread:$0]  %s1, 128, %s22, [#allocation3], 64, 64, 4
    $region9: #{_lambda_.1} parent=1 // pred_fallthru
      _
    // Predicated region
    $region10: #{_lambda_.1} parent=1 // pred_check
      _
    $region11: #{_lambda_.1} parent=1 // pred_check_branch
      %29 = sbr.rel (0) target = $region13
    $region12: #{_lambda_.1} parent=1 // pred_region
      %s31 = ssub.s32 16, 16
      %32 = vsyncadd [#allocation5], %s31
      %s34 = sshll.u32 [#allocation4], 4
      %s35 = int_to_ptr.vmem [resolvable:$true] %s34
      %37 = dma.hbm_to_vmem [thread:$0]  %s2, 16, %s35, [#allocation5]
    $region13: #{_lambda_.1} parent=1 // pred_fallthru
      _
    // Predicated region
    $region14: #{_lambda_.1} parent=1 // pred_check
      _
    $region15: #{_lambda_.1} parent=1 // pred_check_branch
      %39 = sbr.rel (0) target = $region17
    $region16: #{_lambda_.1} parent=1 // pred_region
      _
    $region17: #{_lambda_.1} parent=1 // pred_fallthru
      _
    // Predicated region
    $region18: #{_lambda_.1} parent=1 // pred_check
      _
    $region19: #{_lambda_.1} parent=1 // pred_check_branch
      %41 = sbr.rel (0) target = $region21
    $region20: #{_lambda_.1} parent=1 // pred_region
      %s43 = ssub.s32 16, 16
      %44 = vsyncadd [#allocation5], %s43
      %s46 = sshll.u32 [#allocation6], 4
      %s47 = int_to_ptr.vmem [resolvable:$true] %s46
      %49 = dma.hbm_to_vmem [thread:$0]  %s4, 16, %s47, [#allocation5]
    $region21: #{_lambda_.1} parent=1 // pred_fallthru
      _
    // Predicated region
    $region22: #{_lambda_.1} parent=1 // pred_check
      _
    $region23: #{_lambda_.1} parent=1 // pred_check_branch
      %51 = sbr.rel (0) target = $region25
    $region24: #{_lambda_.1} parent=1 // pred_region
      _
    $region25: #{_lambda_.1} parent=1 // pred_fallthru
      _
    // Predicated region
    $region26: #{_lambda_.1} parent=1 // pred_check
      _
    $region27: #{_lambda_.1} parent=1 // pred_check_branch
      %53 = sbr.rel (0) target = $region29
    $region28: #{_lambda_.1} parent=1 // pred_region
      _
    $region29: #{_lambda_.1} parent=1 // pred_fallthru
      _
    // Predicated region
    $region30: #{_lambda_.1} parent=1 // pred_check
      _
    $region31: #{_lambda_.1} parent=1 // pred_check_branch
      %55 = sbr.rel (0) target = $region33
    $region32: #{_lambda_.1} parent=1 // pred_region
      %56 = dma.done [#allocation3], 128
    $region33: #{_lambda_.1} parent=1 // pred_fallthru
      _
    // Predicated region
    $region34: #{_lambda_.1} parent=1 // pred_check
      _
    $region35: #{_lambda_.1} parent=1 // pred_check_branch
      %58 = sbr.rel (0) target = $region37
    $region36: #{_lambda_.1} parent=1 // pred_region
      %59 = dma.done [#allocation5], 16
    $region37: #{_lambda_.1} parent=1 // pred_fallthru
      _
    // Predicated region
    $region38: #{_lambda_.1} parent=1 // pred_check
      _
    $region39: #{_lambda_.1} parent=1 // pred_check_branch
      %61 = sbr.rel (0) target = $region41
    $region40: #{_lambda_.1} parent=1 // pred_region
      %62 = dma.done [#allocation5], 16
    $region41: #{_lambda_.1} parent=1 // pred_fallthru
      _
    %v63 = vld [vmem:[%s0] sm:$0xff]
    %v64 = vld [vmem:[#allocation2] sm:$0xf]
    %v65 = vld [vmem:[#allocation2 + $0x4] sm:$0x3]
    %v66 = vunpack.c.l.bf16 %v64
    %v67 = vunpack.c.l.bf16 %v65
    %v68 = vld [vmem:[#allocation4] sm:$0x1]
    %v69 = vld [vmem:[%s3] sm:$0xf]
    %v70 = vld [vmem:[%s3 + $0x4] sm:$0xf]
    %v71 = vld [vmem:[%s3 + $0x8] sm:$0xf]
    %v72 = vld [vmem:[%s3 + $0xc] sm:$0xf]
    %v73 = vunpack.c.l.bf16 %v69
    %v74 = vunpack.c.l.bf16 %v70
    %v75 = vunpack.c.l.bf16 %v71
    %v76 = vunpack.c.l.bf16 %v72
    %v77 = vld [vmem:[#allocation6] sm:$0x1]
    %v78 = vld [vmem:[%s5] sm:$0xf]
    %v79 = vld [vmem:[%s5 + $0x4] sm:$0xf]
    %v80 = vld [vmem:[%s5 + $0x8] sm:$0xf]
    %v81 = vld [vmem:[%s5 + $0xc] sm:$0xf]
    %v82 = vunpack.c.l.bf16 %v78
    %v83 = vunpack.c.l.bf16 %v79
    %v84 = vunpack.c.l.bf16 %v80
    %v85 = vunpack.c.l.bf16 %v81
    %v86 = vld [vmem:[%s6] sm:$0x1]
    %v88 = vlaneseq
    %v89 = vshrl.u32 %v88, 7
    %v90 = vsub.s32 0, %v89
    %v91 = vrot.slane %v68, %v90
    %vm93 = vcmask 97280
    %v95 = vsel %vm93, %v63, 0
    %vm97 = vcmask 1043456
    %v99 = vsel %vm97, %v67, 0
    %101 = vmatprep.subr.mxu0 0.0
    %102 = vmatpush1.msra.mxu0 %v66
    %103 = vmatprep.subr.mxu0 0.0
    %104 = vmatpush1.msra.mxu0 %v99
    %105 = vmatprep.subr.mxu0 0.0
    %106 = vmatpush1.msra.mxu0 0.0
    %107 = vmatprep.subr.mxu0 0.0
    %108 = vmatpush1.msra.mxu0 0.0
    %109 = vmatprep.subr.mxu0 0.0
    %110 = vmatpush1.msra.mxu0 0.0
    %111 = vmatprep.subr.mxu0 0.0
    %112 = vmatpush1.msra.mxu0 0.0
    %113 = vmatprep.subr.mxu0 0.0
    %114 = vmatpush1.msra.mxu0 0.0
    %115 = vmatprep.subr.mxu0 0.0
    %116 = vmatpush1.msra.mxu0 0.0
    %117 = vmatprep.subr.mxu0 0.0
    %118 = vmatpush1.msra.mxu0 0.0
    %119 = vmatprep.subr.mxu0 0.0
    %120 = vmatpush1.msra.mxu0 0.0
    %121 = vmatprep.subr.mxu0 0.0
    %122 = vmatpush1.msra.mxu0 0.0
    %123 = vmatprep.subr.mxu0 0.0
    %124 = vmatpush1.msra.mxu0 0.0
    %125 = vmatprep.subr.mxu0 0.0
    %126 = vmatpush1.msra.mxu0 0.0
    %127 = vmatprep.subr.mxu0 0.0
    %128 = vmatpush1.msra.mxu0 0.0
    %129 = vmatprep.subr.mxu0 0.0
    %130 = vmatpush1.msra.mxu0 0.0
    %131 = vmatprep.subr.mxu0 0.0
    %132 = vmatpush1.msra.mxu0 0.0
    %133 = vmatprep.subr.mxu0 0.0
    %134 = vmatpush1.msra.mxu0 0.0
    %135 = vmatprep.subr.mxu0 0.0
    %136 = vmatpush1.msra.mxu0 0.0
    %137 = vmatprep.subr.mxu0 0.0
    %138 = vmatpush1.msra.mxu0 0.0
    %139 = vmatprep.subr.mxu0 0.0
    %140 = vmatpush1.msra.mxu0 0.0
    %141 = vmatprep.subr.mxu0 0.0
    %142 = vmatpush1.msra.mxu0 0.0
    %143 = vmatprep.subr.mxu0 0.0
    %144 = vmatpush1.msra.mxu0 0.0
    %145 = vmatprep.subr.mxu0 0.0
    %146 = vmatpush1.msra.mxu0 0.0
    %147 = vmatprep.subr.mxu0 0.0
    %148 = vmatpush1.msra.mxu0 0.0
    %149 = vmatprep.subr.mxu0 0.0
    %150 = vmatpush1.msra.mxu0 0.0
    %151 = vmatprep.subr.mxu0 0.0
    %152 = vmatpush1.msra.mxu0 0.0
    %153 = vmatprep.subr.mxu0 0.0
    %154 = vmatpush1.msra.mxu0 0.0
    %155 = vmatprep.subr.mxu0 0.0
    %156 = vmatpush1.msra.mxu0 0.0
    %157 = vmatprep.subr.mxu0 0.0
    %158 = vmatpush1.msra.mxu0 0.0
    %159 = vmatprep.subr.mxu0 0.0
    %160 = vmatpush1.msra.mxu0 0.0
    %161 = vmatprep.subr.mxu0 0.0
    %162 = vmatpush1.msra.mxu0 0.0
    %163 = vmatprep.subr.mxu0 0.0
    %164 = vmatpush1.msra.mxu0 0.0
    %165 = vmatprep.mubr.f32.mxu0 0.0
    %166 = vmatmul.mubr.f32.gmra.mrb[0].mxu0 %v95
    %v167 = vpop.f32.mrb[0].mxu0
    %v168 = vadd.f32 %v91, %v167
    %v169 = vpop.f32.mrb[0].mxu0
    %170 = vdwg.mxu0
    %v171 = vmax.f32 %v168, 0.0
    %v173 = vlaneseq
    %v174 = vshrl.u32 %v173, 7
    %v175 = vsub.s32 0, %v174
    %v176 = vrot.slane %v77, %v175
    %vm178 = vcmask 261120
    %v180 = vsel %vm178, %v171, 0
    %182 = vmatprep.subr.mxu0 0.0
    %183 = vmatpush1.msra.mxu0 %v73
    %184 = vmatprep.subr.mxu0 0.0
    %185 = vmatpush1.msra.mxu0 %v74
    %186 = vmatprep.subr.mxu0 0.0
    %187 = vmatpush1.msra.mxu0 %v75
    %188 = vmatprep.subr.mxu0 0.0
    %189 = vmatpush1.msra.mxu0 %v76
    %190 = vmatprep.subr.mxu0 0.0
    %191 = vmatpush1.msra.mxu0 0.0
    %192 = vmatprep.subr.mxu0 0.0
    %193 = vmatpush1.msra.mxu0 0.0
    %194 = vmatprep.subr.mxu0 0.0
    %195 = vmatpush1.msra.mxu0 0.0
    %196 = vmatprep.subr.mxu0 0.0
    %197 = vmatpush1.msra.mxu0 0.0
    %198 = vmatprep.subr.mxu0 0.0
    %199 = vmatpush1.msra.mxu0 0.0
    %200 = vmatprep.subr.mxu0 0.0
    %201 = vmatpush1.msra.mxu0 0.0
    %202 = vmatprep.subr.mxu0 0.0
    %203 = vmatpush1.msra.mxu0 0.0
    %204 = vmatprep.subr.mxu0 0.0
    %205 = vmatpush1.msra.mxu0 0.0
    %206 = vmatprep.subr.mxu0 0.0
    %207 = vmatpush1.msra.mxu0 0.0
    %208 = vmatprep.subr.mxu0 0.0
    %209 = vmatpush1.msra.mxu0 0.0
    %210 = vmatprep.subr.mxu0 0.0
    %211 = vmatpush1.msra.mxu0 0.0
    %212 = vmatprep.subr.mxu0 0.0
    %213 = vmatpush1.msra.mxu0 0.0
    %214 = vmatprep.subr.mxu0 0.0
    %215 = vmatpush1.msra.mxu0 0.0
    %216 = vmatprep.subr.mxu0 0.0
    %217 = vmatpush1.msra.mxu0 0.0
    %218 = vmatprep.subr.mxu0 0.0
    %219 = vmatpush1.msra.mxu0 0.0
    %220 = vmatprep.subr.mxu0 0.0
    %221 = vmatpush1.msra.mxu0 0.0
    %222 = vmatprep.subr.mxu0 0.0
    %223 = vmatpush1.msra.mxu0 0.0
    %224 = vmatprep.subr.mxu0 0.0
    %225 = vmatpush1.msra.mxu0 0.0
    %226 = vmatprep.subr.mxu0 0.0
    %227 = vmatpush1.msra.mxu0 0.0
    %228 = vmatprep.subr.mxu0 0.0
    %229 = vmatpush1.msra.mxu0 0.0
    %230 = vmatprep.subr.mxu0 0.0
    %231 = vmatpush1.msra.mxu0 0.0
    %232 = vmatprep.subr.mxu0 0.0
    %233 = vmatpush1.msra.mxu0 0.0
    %234 = vmatprep.subr.mxu0 0.0
    %235 = vmatpush1.msra.mxu0 0.0
    %236 = vmatprep.subr.mxu0 0.0
    %237 = vmatpush1.msra.mxu0 0.0
    %238 = vmatprep.subr.mxu0 0.0
    %239 = vmatpush1.msra.mxu0 0.0
    %240 = vmatprep.subr.mxu0 0.0
    %241 = vmatpush1.msra.mxu0 0.0
    %242 = vmatprep.subr.mxu0 0.0
    %243 = vmatpush1.msra.mxu0 0.0
    %244 = vmatprep.subr.mxu0 0.0
    %245 = vmatpush1.msra.mxu0 0.0
    %246 = vmatprep.mubr.f32.mxu0 0.0
    %247 = vmatmul.mubr.f32.gmra.mrb[0].mxu0 %v180
    %v248 = vpop.f32.mrb[0].mxu0
    %v249 = vadd.f32 %v176, %v248
    %v250 = vpop.f32.mrb[0].mxu0
    %251 = vdwg.mxu0
    %v252 = vmax.f32 %v249, 0.0
    %v254 = vlaneseq
    %v255 = vshrl.u32 %v254, 7
    %v256 = vsub.s32 0, %v255
    %v257 = vrot.slane %v86, %v256
    %v260 = vsel %vm178, %v252, 0
    %262 = vmatprep.subr.mxu0 0.0
    %263 = vmatpush1.msra.mxu0 %v82
    %264 = vmatprep.subr.mxu0 0.0
    %265 = vmatpush1.msra.mxu0 %v83
    %266 = vmatprep.subr.mxu0 0.0
    %267 = vmatpush1.msra.mxu0 %v84
    %268 = vmatprep.subr.mxu0 0.0
    %269 = vmatpush1.msra.mxu0 %v85
    %270 = vmatprep.subr.mxu0 0.0
    %271 = vmatpush1.msra.mxu0 0.0
    %272 = vmatprep.subr.mxu0 0.0
    %273 = vmatpush1.msra.mxu0 0.0
    %274 = vmatprep.subr.mxu0 0.0
    %275 = vmatpush1.msra.mxu0 0.0
    %276 = vmatprep.subr.mxu0 0.0
    %277 = vmatpush1.msra.mxu0 0.0
    %278 = vmatprep.subr.mxu0 0.0
    %279 = vmatpush1.msra.mxu0 0.0
    %280 = vmatprep.subr.mxu0 0.0
    %281 = vmatpush1.msra.mxu0 0.0
    %282 = vmatprep.subr.mxu0 0.0
    %283 = vmatpush1.msra.mxu0 0.0
    %284 = vmatprep.subr.mxu0 0.0
    %285 = vmatpush1.msra.mxu0 0.0
    %286 = vmatprep.subr.mxu0 0.0
    %287 = vmatpush1.msra.mxu0 0.0
    %288 = vmatprep.subr.mxu0 0.0
    %289 = vmatpush1.msra.mxu0 0.0
    %290 = vmatprep.subr.mxu0 0.0
    %291 = vmatpush1.msra.mxu0 0.0
    %292 = vmatprep.subr.mxu0 0.0
    %293 = vmatpush1.msra.mxu0 0.0
    %294 = vmatprep.subr.mxu0 0.0
    %295 = vmatpush1.msra.mxu0 0.0
    %296 = vmatprep.subr.mxu0 0.0
    %297 = vmatpush1.msra.mxu0 0.0
    %298 = vmatprep.subr.mxu0 0.0
    %299 = vmatpush1.msra.mxu0 0.0
    %300 = vmatprep.subr.mxu0 0.0
    %301 = vmatpush1.msra.mxu0 0.0
    %302 = vmatprep.subr.mxu0 0.0
    %303 = vmatpush1.msra.mxu0 0.0
    %304 = vmatprep.subr.mxu0 0.0
    %305 = vmatpush1.msra.mxu0 0.0
    %306 = vmatprep.subr.mxu0 0.0
    %307 = vmatpush1.msra.mxu0 0.0
    %308 = vmatprep.subr.mxu0 0.0
    %309 = vmatpush1.msra.mxu0 0.0
    %310 = vmatprep.subr.mxu0 0.0
    %311 = vmatpush1.msra.mxu0 0.0
    %312 = vmatprep.subr.mxu0 0.0
    %313 = vmatpush1.msra.mxu0 0.0
    %314 = vmatprep.subr.mxu0 0.0
    %315 = vmatpush1.msra.mxu0 0.0
    %316 = vmatprep.subr.mxu0 0.0
    %317 = vmatpush1.msra.mxu0 0.0
    %318 = vmatprep.subr.mxu0 0.0
    %319 = vmatpush1.msra.mxu0 0.0
    %320 = vmatprep.subr.mxu0 0.0
    %321 = vmatpush1.msra.mxu0 0.0
    %322 = vmatprep.subr.mxu0 0.0
    %323 = vmatpush1.msra.mxu0 0.0
    %324 = vmatprep.subr.mxu0 0.0
    %325 = vmatpush1.msra.mxu0 0.0
    %326 = vmatprep.mubr.f32.mxu0 0.0
    %327 = vmatmul.mubr.f32.gmra.mrb[0].mxu0 %v260
    %v328 = vpop.f32.mrb[0].mxu0
    %v329 = vadd.f32 %v257, %v328
    %v330 = vpop.f32.mrb[0].mxu0
    %331 = vdwg.mxu0
    %v332 = vtanh.pop %v329
    %vm333 = vcmask 31744
    %334 = vst.msk [vmem:[%s7] sm:$0xff] %vm333, %v332
    // Predicated region
    $region42: #{_lambda_.1} parent=1 // pred_check
      _
    $region43: #{_lambda_.1} parent=1 // pred_check_branch
      %336 = sbr.rel (0) target = $region45
    $region44: #{_lambda_.1} parent=1 // pred_region
      _
    $region45: #{_lambda_.1} parent=1 // pred_fallthru
      _
    // Predicated region
    $region46: #{_lambda_.1} parent=1 // pred_check
      _
    $region47: #{_lambda_.1} parent=1 // pred_check_branch
      %338 = sbr.rel (0) target = $region49
    $region48: #{_lambda_.1} parent=1 // pred_region
      _
    $region49: #{_lambda_.1} parent=1 // pred_fallthru
      _
    %339 = vsyncpa [#allocation3], 1
    %340 = vsyncpa [#allocation5], 1

</llo_original>
